<compile_context>
chip_gen: v6e
topology: v6e:2x2x1
jax: 0.10.0
libtpu: 0.0.40
codegen_flags: <defaults>
</compile_context>

<pallas_src>
import math
import functools

import jax
import jax.numpy as jnp
from jax import lax
from jax.experimental import pallas as pl
from jax.experimental.pallas import tpu as pltpu

_NEG = -1e30
# Contract dim 1 of both operands: A @ B^T without materializing B^T.
_NT_DIMS = (((1,), (1,)), ((), ()))


# -----------------------------------------------------------------------------
# Pallas kernel: whole batch, whole attention, one invocation, no grid.
# -----------------------------------------------------------------------------
def _fusion_kernel(x_ref, w_ref, b_ref, hmask_ref, bias_ref, out_ref, *,
                   L, B, S, nhead):
    NQ = L * B                      # query rows, (l, b) order
    NK = S * B                      # key/value rows, (s, b) order

    # ---- packed activations: all row slices are sublane-aligned (mult. of 8).
    tgt  = x_ref[0:NQ, :]                          # residual / query base
    qpos = x_ref[NQ:2 * NQ, :]
    mem  = x_ref[2 * NQ:2 * NQ + NK, :]            # value input
    pos  = x_ref[2 * NQ + NK:2 * NQ + 2 * NK, :]

    wq = w_ref[0]; wk = w_ref[1]; wv = w_ref[2]; wo = w_ref[3]   # (D, D) each
    bq = b_ref[0]; bk = b_ref[1]; bv = b_ref[2]; bo = b_ref[3]   # (1, D) each
    hmask = hmask_ref[...]                          # (nhead*NK, D) head indicator

    # ---- input projections: three small, aligned, independent MXU pushes.
    # 1/sqrt(head_dim) is already folded into wq / bq at pack time.
    q = jnp.dot(tgt + qpos, wq, preferred_element_type=jnp.float32) + bq   # (NQ, D)
    k = jnp.dot(mem + pos,  wk, preferred_element_type=jnp.float32) + bk   # (NK, D)
    v = jnp.dot(mem,        wv, preferred_element_type=jnp.float32) + bv   # (NK, D)

    # ---- block-diagonal K / V over (head, key-row): rows ordered (h, s, b).
    k_bd = jnp.concatenate([k] * nhead, axis=0) * hmask    # (nhead*NK, D)
    v_bd = jnp.concatenate([v] * nhead, axis=0) * hmask    # (nhead*NK, D)

    # ---- all (batch, head) scores in ONE MXU push; lane-dense (NQ, nhead*NK)
    # tile; D contracted on both operands so K is never transposed explicitly.
    s = lax.dot_general(q, k_bd, _NT_DIMS, preferred_element_type=jnp.float32)
    s = s + bias_ref[...]            # key-padding + cross-batch -1e30 bias

    # ---- softmax fused across head/batch blocks (row max >= every block max,
    # so the shift is exact per block).
    s = s - jnp.max(s, axis=-1, keepdims=True)
    p = jnp.exp(s)                   # (NQ, nhead*NK)

    # ---- deferred normalization: PV and per-head denominators are two
    # independent MXU pushes (hmask doubles as the segment-sum matrix).
    o_un  = jnp.dot(p, v_bd,  preferred_element_type=jnp.float32)   # (NQ, D)
    denom = jnp.dot(p, hmask, preferred_element_type=jnp.float32)   # (NQ, D)
    attn = o_un * pl.reciprocal(denom, approx=True)                 # EUP, not VALU

    # ---- output projection + residual.
    out = jnp.dot(attn, wo, preferred_element_type=jnp.float32) + bo
    out_ref[...] = (tgt + out).astype(out_ref.dtype)


# -----------------------------------------------------------------------------
# Parameter packing (done once): scale folded into Wq / bq, weights pre-transposed.
# -----------------------------------------------------------------------------
def pack_params(in_proj_w, in_proj_b, out_proj_w, out_proj_b, *, nhead):
    D = out_proj_w.shape[0]
    scale = 1.0 / math.sqrt(D // nhead)
    w_packed = jnp.stack([in_proj_w[0 * D:1 * D].T * scale,
                          in_proj_w[1 * D:2 * D].T,
                          in_proj_w[2 * D:3 * D].T,
                          out_proj_w.T], axis=0).astype(jnp.float32)          # (4, D, D)
    b_packed = jnp.stack([in_proj_b[0 * D:1 * D] * scale,
                          in_proj_b[1 * D:2 * D],
                          in_proj_b[2 * D:3 * D],
                          out_proj_b], axis=0)[:, None, :].astype(jnp.float32)  # (4, 1, D)
    return w_packed, b_packed


# -----------------------------------------------------------------------------
# Wrapper: consumes PyTorch (seq, batch, D) layout directly — no transposes.
# -----------------------------------------------------------------------------
def vision_language_fusion(tgt, memory, params, memory_key_padding_mask=None,
                           pos=None, query_pos=None, *, nhead):
    """tgt: (L, B, D); memory: (S, B, D); mask: (B, S) bool (True = padded key).

    params = pack_params(...): ((4, D, D) weights, (4, 1, D) biases).
    """
    L, B, D = tgt.shape
    S = memory.shape[0]
    f32 = jnp.float32
    NQ, NK = L * B, S * B
    hd = D // nhead
    w_packed, b_packed = params

    # Flattening (L,B,D)->(L*B,D) keeps (l,b)/(s,b) row order: zero transposes.
    tgt_f = tgt.reshape(NQ, D).astype(f32)
    qpos_f = (jnp.zeros((NQ, D), f32) if query_pos is None
              else query_pos.reshape(NQ, D).astype(f32))
    mem_f = memory.reshape(NK, D).astype(f32)
    pos_f = (jnp.zeros((NK, D), f32) if pos is None
             else pos.reshape(NK, D).astype(f32))
    x = jnp.concatenate([tgt_f, qpos_f, mem_f, pos_f], axis=0)   # one input stream

    # Static head-block indicator (constant under jit); also the segment matrix.
    hmask = (jnp.arange(nhead * NK)[:, None] // NK ==
             jnp.arange(D)[None, :] // hd).astype(f32)           # (nhead*NK, D)

    # Additive score bias: key padding + cross-batch masking.  Rows in (l, b)
    # order, columns in (h, s, b') order -> shape (NQ, nhead*NK).
    if memory_key_padding_mask is None:
        pad = jnp.zeros((B, S), f32)
    else:
        pad = jnp.where(memory_key_padding_mask, _NEG, 0.0).astype(f32)   # (B, S)
    cross = jnp.where(jnp.eye(B, dtype=bool), 0.0, _NEG).astype(f32)      # (B, B)
    per_key = pad.T[None, :, :] + cross[:, None, :]                       # (B, S, B)
    bias = jnp.tile(per_key.reshape(1, B, 1, NK),
                    (L, 1, nhead, 1)).reshape(NQ, nhead * NK)

    kernel = functools.partial(_fusion_kernel, L=L, B=B, S=S, nhead=nhead)
    vmem = pl.BlockSpec(memory_space=pltpu.MemorySpace.VMEM)
    out = pl.pallas_call(
        kernel,
        out_shape=jax.ShapeDtypeStruct((NQ, D), f32),
        in_specs=[vmem] * 5,
        out_specs=vmem,
    )(x, w_packed.astype(f32), b_packed.astype(f32), hmask, bias)
    return out.reshape(L, B, D)


# -----------------------------------------------------------------------------
# Pure-JAX reference (mirrors nn.MultiheadAttention math) for verification.
# -----------------------------------------------------------------------------
def reference(tgt, memory, raw_params, mask, pos, query_pos, *, nhead):
    in_w, in_b, out_w, out_b = raw_params
    D = tgt.shape[-1]
    q = tgt + query_pos
    k = memory + pos
    v = memory
    L, B, _ = q.shape
    S = k.shape[0]
    hd = D // nhead
    scale = 1.0 / math.sqrt(hd)

    qp = jnp.einsum('lbd,ed->lbe', q, in_w[0 * D:1 * D]) + in_b[0 * D:1 * D]
    kp = jnp.einsum('sbd,ed->sbe', k, in_w[1 * D:2 * D]) + in_b[1 * D:2 * D]
    vp = jnp.einsum('sbd,ed->sbe', v, in_w[2 * D:3 * D]) + in_b[2 * D:3 * D]

    qh = qp.reshape(L, B, nhead, hd) * scale
    kh = kp.reshape(S, B, nhead, hd)
    vh = vp.reshape(S, B, nhead, hd)

    scores = jnp.einsum('lbhd,sbhd->bhls', qh, kh)
    if mask is not None:
        scores = scores + jnp.where(mask, -1e30, 0.0)[:, None, None, :]
    p = jax.nn.softmax(scores, axis=-1)
    o = jnp.einsum('bhls,sbhd->lbhd', p, vh).reshape(L, B, D)
    out = jnp.einsum('lbd,ed->lbe', o, out_w) + out_b
    return tgt + out


# -----------------------------------------------------------------------------
if __name__ == "__main__":
    D_MODEL = 32
    NHEAD = 4
    L = 8      # tgt (vision query) sequence length
    S = 16     # memory (language) sequence length
    B = 2      # batch

    key = jax.random.PRNGKey(0)
    ks = jax.random.split(key, 10)

    # nn.MultiheadAttention parameter shapes:
    #   in_proj_weight (3D, D), in_proj_bias (3D), out_proj (D, D) + (D,)
    in_proj_w = jax.random.normal(ks[0], (3 * D_MODEL, D_MODEL), jnp.float32) * 0.1
    in_proj_b = jax.random.normal(ks[1], (3 * D_MODEL,), jnp.float32) * 0.1
    out_proj_w = jax.random.normal(ks[2], (D_MODEL, D_MODEL), jnp.float32) * 0.1
    out_proj_b = jax.random.normal(ks[3], (D_MODEL,), jnp.float32) * 0.1
    params = pack_params(in_proj_w, in_proj_b, out_proj_w, out_proj_b, nhead=NHEAD)

    # Inputs in PyTorch layout (seq, batch, d_model).
    tgt = jax.random.normal(ks[4], (L, B, D_MODEL), jnp.float32)
    memory = jax.random.normal(ks[5], (S, B, D_MODEL), jnp.float32)
    query_pos = jax.random.normal(ks[6], (L, B, D_MODEL), jnp.float32)
    pos = jax.random.normal(ks[7], (S, B, D_MODEL), jnp.float32)
    # key_padding_mask: True = ignore that memory position (pad last 3 of batch 1)
    memory_key_padding_mask = jnp.zeros((B, S), jnp.bool_).at[1, -3:].set(True)

    # jit the wrapper so the small host-side prep (concat / bias build) fuses
    # into the same XLA program as the Pallas kernel (single dispatch chain).
    fused = jax.jit(functools.partial(vision_language_fusion, nhead=NHEAD))
    out = fused(tgt, memory, params, memory_key_padding_mask, pos, query_pos)
    out = jax.block_until_ready(out)

    ref = reference(tgt, memory, (in_proj_w, in_proj_b, out_proj_w, out_proj_b),
                    memory_key_padding_mask, pos, query_pos, nhead=NHEAD)
    ref = jax.block_until_ready(ref)

    assert out.shape == (L, B, D_MODEL)
    assert jnp.allclose(out, ref, rtol=1e-3, atol=1e-3), (
        f"max abs err {jnp.max(jnp.abs(out - ref))}")

    print("KERNEL_OK")
</pallas_src>

<mosaic_0001>
module attributes {stable_mosaic.version = 11 : i64} {
  func.func @_fusion_kernel(%arg0: memref<96x32xf32, #tpu.memory_space<vmem>>, %arg1: memref<4x32x32xf32, #tpu.memory_space<vmem>>, %arg2: memref<4x1x32xf32, #tpu.memory_space<vmem>>, %arg3: memref<128x32xf32, #tpu.memory_space<vmem>>, %arg4: memref<16x128xf32, #tpu.memory_space<vmem>>, %arg5: memref<16x32xf32, #tpu.memory_space<vmem>>) attributes {dimension_semantics = [], scalar_prefetch = 0 : i64, scratch_operands = 0 : i64, tpu.core_type = #tpu.core_type<tc>} {
    %c0 = arith.constant 0 : index
    %c0_0 = arith.constant 0 : index
    %0 = vector.load %arg0[%c0, %c0_0] : memref<96x32xf32, #tpu.memory_space<vmem>>, vector<16x32xf32>
    %c16 = arith.constant 16 : index
    %c0_1 = arith.constant 0 : index
    %1 = vector.load %arg0[%c16, %c0_1] : memref<96x32xf32, #tpu.memory_space<vmem>>, vector<16x32xf32>
    %c32 = arith.constant 32 : index
    %c0_2 = arith.constant 0 : index
    %2 = vector.load %arg0[%c32, %c0_2] : memref<96x32xf32, #tpu.memory_space<vmem>>, vector<32x32xf32>
    %c64 = arith.constant 64 : index
    %c0_3 = arith.constant 0 : index
    %3 = vector.load %arg0[%c64, %c0_3] : memref<96x32xf32, #tpu.memory_space<vmem>>, vector<32x32xf32>
    %c0_4 = arith.constant 0 : index
    %c0_5 = arith.constant 0 : index
    %c0_6 = arith.constant 0 : index
    %4 = vector.load %arg1[%c0_4, %c0_5, %c0_6] : memref<4x32x32xf32, #tpu.memory_space<vmem>>, vector<1x32x32xf32>
    %5 = vector.shape_cast %4 : vector<1x32x32xf32> to vector<32x32xf32>
    %c1 = arith.constant 1 : index
    %c0_7 = arith.constant 0 : index
    %c0_8 = arith.constant 0 : index
    %6 = vector.load %arg1[%c1, %c0_7, %c0_8] : memref<4x32x32xf32, #tpu.memory_space<vmem>>, vector<1x32x32xf32>
    %7 = vector.shape_cast %6 : vector<1x32x32xf32> to vector<32x32xf32>
    %c2 = arith.constant 2 : index
    %c0_9 = arith.constant 0 : index
    %c0_10 = arith.constant 0 : index
    %8 = vector.load %arg1[%c2, %c0_9, %c0_10] : memref<4x32x32xf32, #tpu.memory_space<vmem>>, vector<1x32x32xf32>
    %9 = vector.shape_cast %8 : vector<1x32x32xf32> to vector<32x32xf32>
    %c3 = arith.constant 3 : index
    %c0_11 = arith.constant 0 : index
    %c0_12 = arith.constant 0 : index
    %10 = vector.load %arg1[%c3, %c0_11, %c0_12] : memref<4x32x32xf32, #tpu.memory_space<vmem>>, vector<1x32x32xf32>
    %11 = vector.shape_cast %10 : vector<1x32x32xf32> to vector<32x32xf32>
    %c0_13 = arith.constant 0 : index
    %c0_14 = arith.constant 0 : index
    %c0_15 = arith.constant 0 : index
    %12 = vector.load %arg2[%c0_13, %c0_14, %c0_15] : memref<4x1x32xf32, #tpu.memory_space<vmem>>, vector<1x1x32xf32>
    %13 = vector.shape_cast %12 : vector<1x1x32xf32> to vector<1x32xf32>
    %c1_16 = arith.constant 1 : index
    %c0_17 = arith.constant 0 : index
    %c0_18 = arith.constant 0 : index
    %14 = vector.load %arg2[%c1_16, %c0_17, %c0_18] : memref<4x1x32xf32, #tpu.memory_space<vmem>>, vector<1x1x32xf32>
    %15 = vector.shape_cast %14 : vector<1x1x32xf32> to vector<1x32xf32>
    %c2_19 = arith.constant 2 : index
    %c0_20 = arith.constant 0 : index
    %c0_21 = arith.constant 0 : index
    %16 = vector.load %arg2[%c2_19, %c0_20, %c0_21] : memref<4x1x32xf32, #tpu.memory_space<vmem>>, vector<1x1x32xf32>
    %17 = vector.shape_cast %16 : vector<1x1x32xf32> to vector<1x32xf32>
    %c3_22 = arith.constant 3 : index
    %c0_23 = arith.constant 0 : index
    %c0_24 = arith.constant 0 : index
    %18 = vector.load %arg2[%c3_22, %c0_23, %c0_24] : memref<4x1x32xf32, #tpu.memory_space<vmem>>, vector<1x1x32xf32>
    %19 = vector.shape_cast %18 : vector<1x1x32xf32> to vector<1x32xf32>
    %c0_25 = arith.constant 0 : index
    %c0_26 = arith.constant 0 : index
    %20 = vector.load %arg3[%c0_25, %c0_26] : memref<128x32xf32, #tpu.memory_space<vmem>>, vector<128x32xf32>
    %21 = arith.addf %0, %1 : vector<16x32xf32>
    %cst = arith.constant dense<0.000000e+00> : vector<16x32xf32>
    %22 = tpu.matmul %21, %5, %cst {dimension_numbers = #tpu.dot_dimension_numbers<[1], [0], [0], [1], [0, 0, 1, 1], [], []>} : vector<16x32xf32>, vector<32x32xf32>, vector<16x32xf32> -> vector<16x32xf32>
    %23 = vector.broadcast %13 : vector<1x32xf32> to vector<16x32xf32>
    %24 = arith.addf %22, %23 : vector<16x32xf32>
    %25 = arith.addf %2, %3 : vector<32x32xf32>
    %cst_27 = arith.constant dense<0.000000e+00> : vector<32x32xf32>
    %26 = tpu.matmul %25, %7, %cst_27 {dimension_numbers = #tpu.dot_dimension_numbers<[1], [0], [0], [1], [0, 0, 1, 1], [], []>} : vector<32x32xf32>, vector<32x32xf32>, vector<32x32xf32> -> vector<32x32xf32>
    %27 = vector.broadcast %15 : vector<1x32xf32> to vector<32x32xf32>
    %28 = arith.addf %26, %27 : vector<32x32xf32>
    %cst_28 = arith.constant dense<0.000000e+00> : vector<32x32xf32>
    %29 = tpu.matmul %2, %9, %cst_28 {dimension_numbers = #tpu.dot_dimension_numbers<[1], [0], [0], [1], [0, 0, 1, 1], [], []>} : vector<32x32xf32>, vector<32x32xf32>, vector<32x32xf32> -> vector<32x32xf32>
    %30 = vector.broadcast %17 : vector<1x32xf32> to vector<32x32xf32>
    %31 = arith.addf %29, %30 : vector<32x32xf32>
    %32 = tpu.concatenate %28, %28, %28, %28 in 0 : vector<32x32xf32>, vector<32x32xf32>, vector<32x32xf32>, vector<32x32xf32> -> vector<128x32xf32>
    %33 = arith.mulf %32, %20 : vector<128x32xf32>
    %34 = tpu.concatenate %31, %31, %31, %31 in 0 : vector<32x32xf32>, vector<32x32xf32>, vector<32x32xf32>, vector<32x32xf32> -> vector<128x32xf32>
    %35 = arith.mulf %34, %20 : vector<128x32xf32>
    %cst_29 = arith.constant dense<0.000000e+00> : vector<16x128xf32>
    %36 = tpu.matmul %24, %33, %cst_29 {dimension_numbers = #tpu.dot_dimension_numbers<[1], [1], [0], [0], [0, 0, 1, 0], [], []>} : vector<16x32xf32>, vector<128x32xf32>, vector<16x128xf32> -> vector<16x128xf32>
    %c0_30 = arith.constant 0 : index
    %c0_31 = arith.constant 0 : index
    %37 = vector.load %arg4[%c0_30, %c0_31] : memref<16x128xf32, #tpu.memory_space<vmem>>, vector<16x128xf32>
    %38 = arith.addf %36, %37 : vector<16x128xf32>
    %cst_32 = arith.constant dense<0xFF800000> : vector<16xf32>
    %39 = vector.multi_reduction <maximumf>, %38, %cst_32 [1] : vector<16x128xf32> to vector<16xf32>
    %40 = vector.shape_cast %39 : vector<16xf32> to vector<16x1xf32>
    %41 = vector.broadcast %40 : vector<16x1xf32> to vector<16x128xf32>
    %42 = arith.subf %38, %41 : vector<16x128xf32>
    %43 = math.exp %42 : vector<16x128xf32>
    %cst_33 = arith.constant dense<0.000000e+00> : vector<16x32xf32>
    %44 = tpu.matmul %43, %35, %cst_33 {dimension_numbers = #tpu.dot_dimension_numbers<[1], [0], [0], [1], [0, 0, 1, 1], [], []>} : vector<16x128xf32>, vector<128x32xf32>, vector<16x32xf32> -> vector<16x32xf32>
    %cst_34 = arith.constant dense<0.000000e+00> : vector<16x32xf32>
    %45 = tpu.matmul %43, %20, %cst_34 {dimension_numbers = #tpu.dot_dimension_numbers<[1], [0], [0], [1], [0, 0, 1, 1], [], []>} : vector<16x128xf32>, vector<128x32xf32>, vector<16x32xf32> -> vector<16x32xf32>
    %46 = tpu.reciprocal %45 {approx = true} : vector<16x32xf32> -> vector<16x32xf32>
    %47 = arith.mulf %44, %46 : vector<16x32xf32>
    %cst_35 = arith.constant dense<0.000000e+00> : vector<16x32xf32>
    %48 = tpu.matmul %47, %11, %cst_35 {dimension_numbers = #tpu.dot_dimension_numbers<[1], [0], [0], [1], [0, 0, 1, 1], [], []>} : vector<16x32xf32>, vector<32x32xf32>, vector<16x32xf32> -> vector<16x32xf32>
    %49 = vector.broadcast %19 : vector<1x32xf32> to vector<16x32xf32>
    %50 = arith.addf %48, %49 : vector<16x32xf32>
    %51 = arith.addf %0, %50 : vector<16x32xf32>
    %c0_36 = arith.constant 0 : index
    %c0_37 = arith.constant 0 : index
    %52 = vector.load %arg5[%c0_36, %c0_37] : memref<16x32xf32, #tpu.memory_space<vmem>>, vector<16x32xf32>
    tpu.vector_store %arg5[%c0_36, %c0_37], %51 {strides = array<i32>} : memref<16x32xf32, #tpu.memory_space<vmem>>, vector<16x32xf32>,
    return
  }
}

</mosaic_0001>

<llo_original>
// kernel: tile.6
$region0: #{tile.6}
  #allocation0 [shape = 's32[1]{0}', space=sflag, size = 0x4, scoped, tag = 'scoped memory for tile.6']
  %s0 = inlined_call_operand.vmem [shape: f32[2,32], index: 0, kind: input, shape index: {}]
  %s1 = inlined_call_operand.vmem [shape: f32[8,1,1,2,4,1,1,32], index: 1, kind: output, shape index: {}]
  // Predicated region
  $region2: #{tile.6} parent=0 // pred_check
    _
  $region3: #{tile.6} parent=0 // pred_check_branch
    %3 = sbr.rel (0) target = $region5
  $region4: #{tile.6} parent=0 // pred_region
    _
  $region5: #{tile.6} parent=0 // pred_fallthru
    _
  %v4 = vld [vmem:[%s0] ss:$0 sm:$0xff]
  %5 = vst [vmem:[%s1] sm:$0xf] %v4
  %s6 = scalar_lea.vmem %s1, 8
  %7 = vst [vmem:[%s6] sm:$0xf] %v4
  %s8 = scalar_lea.vmem %s1, 16
  %9 = vst [vmem:[%s8] sm:$0xf] %v4
  %s10 = scalar_lea.vmem %s1, 24
  %11 = vst [vmem:[%s10] sm:$0xf] %v4
  %s12 = scalar_lea.vmem %s1, 32
  %13 = vst [vmem:[%s12] sm:$0xf] %v4
  %s14 = scalar_lea.vmem %s1, 40
  %15 = vst [vmem:[%s14] sm:$0xf] %v4
  %s16 = scalar_lea.vmem %s1, 48
  %17 = vst [vmem:[%s16] sm:$0xf] %v4
  %s18 = scalar_lea.vmem %s1, 56
  %19 = vst [vmem:[%s18] sm:$0xf] %v4
  %s20 = scalar_lea.vmem %s0, 1
  %v21 = vld [vmem:[%s20] ss:$0 sm:$0xff]
  %s22 = scalar_lea.vmem %s1, 4
  %23 = vst [vmem:[%s22] sm:$0xf] %v21
  %s24 = scalar_lea.vmem %s1, 12
  %25 = vst [vmem:[%s24] sm:$0xf] %v21
  %s26 = scalar_lea.vmem %s1, 20
  %27 = vst [vmem:[%s26] sm:$0xf] %v21
  %s28 = scalar_lea.vmem %s1, 28
  %29 = vst [vmem:[%s28] sm:$0xf] %v21
  %s30 = scalar_lea.vmem %s1, 36
  %31 = vst [vmem:[%s30] sm:$0xf] %v21
  %s32 = scalar_lea.vmem %s1, 44
  %33 = vst [vmem:[%s32] sm:$0xf] %v21
  %s34 = scalar_lea.vmem %s1, 52
  %35 = vst [vmem:[%s34] sm:$0xf] %v21
  %s36 = scalar_lea.vmem %s1, 60
  %37 = vst [vmem:[%s36] sm:$0xf] %v21

// kernel: tile.7
$region0: #{tile.7}
  %s0 = inlined_call_operand.vmem [shape: f32[8,1,1,2,4,1,1,32], index: 0, kind: input, shape index: {}]
  %s1 = inlined_call_operand.vmem [shape: f32[16,128], index: 1, kind: output, shape index: {}]
  $region1: #{tile.7} parent=0
    #allocation0 [shape = 'u8[65536]{0}', space=vmem, size = 0x10000, scoped, tag = 'scoped mem for input reshape']
    %s3 = sshll.u32 1, 4
    %s4 = ssub.s32 %s3, 1
    %s5 = smul.addr 4, 15
    %s6 = scalar_lea.vmem %s0, %s5
    %v7 = vld [vmem:[%s6] sm:%s4]
    %s8 = scalar_lea.vmem [#allocation0], 120
    %9 = vst [vmem:[%s8] sm:%s4] %v7
    %s10 = smul.addr 4, 14
    %s11 = scalar_lea.vmem %s0, %s10
    %v12 = vld [vmem:[%s11] sm:%s4]
    %s13 = scalar_lea.vmem [#allocation0], 112
    %14 = vst [vmem:[%s13] sm:%s4] %v12
    %s15 = smul.addr 4, 13
    %s16 = scalar_lea.vmem %s0, %s15
    %v17 = vld [vmem:[%s16] sm:%s4]
    %s18 = scalar_lea.vmem [#allocation0], 104
    %19 = vst [vmem:[%s18] sm:%s4] %v17
    %s20 = smul.addr 4, 12
    %s21 = scalar_lea.vmem %s0, %s20
    %v22 = vld [vmem:[%s21] sm:%s4]
    %s23 = scalar_lea.vmem [#allocation0], 96
    %24 = vst [vmem:[%s23] sm:%s4] %v22
    %s25 = smul.addr 4, 11
    %s26 = scalar_lea.vmem %s0, %s25
    %v27 = vld [vmem:[%s26] sm:%s4]
    %s28 = scalar_lea.vmem [#allocation0], 88
    %29 = vst [vmem:[%s28] sm:%s4] %v27
    %s30 = smul.addr 4, 10
    %s31 = scalar_lea.vmem %s0, %s30
    %v32 = vld [vmem:[%s31] sm:%s4]
    %s33 = scalar_lea.vmem [#allocation0], 80
    %34 = vst [vmem:[%s33] sm:%s4] %v32
    %s35 = smul.addr 4, 9
    %s36 = scalar_lea.vmem %s0, %s35
    %v37 = vld [vmem:[%s36] sm:%s4]
    %s38 = scalar_lea.vmem [#allocation0], 72
    %39 = vst [vmem:[%s38] sm:%s4] %v37
    %s40 = smul.addr 4, 8
    %s41 = scalar_lea.vmem %s0, %s40
    %v42 = vld [vmem:[%s41] sm:%s4]
    %s43 = scalar_lea.vmem [#allocation0], 64
    %44 = vst [vmem:[%s43] sm:%s4] %v42
    %s45 = smul.addr 4, 7
    %s46 = scalar_lea.vmem %s0, %s45
    %v47 = vld [vmem:[%s46] sm:%s4]
    %s48 = scalar_lea.vmem [#allocation0], 56
    %49 = vst [vmem:[%s48] sm:%s4] %v47
    %s50 = smul.addr 4, 6
    %s51 = scalar_lea.vmem %s0, %s50
    %v52 = vld [vmem:[%s51] sm:%s4]
    %s53 = scalar_lea.vmem [#allocation0], 48
    %54 = vst [vmem:[%s53] sm:%s4] %v52
    %s55 = smul.addr 4, 5
    %s56 = scalar_lea.vmem %s0, %s55
    %v57 = vld [vmem:[%s56] sm:%s4]
    %s58 = scalar_lea.vmem [#allocation0], 40
    %59 = vst [vmem:[%s58] sm:%s4] %v57
    %s60 = smul.addr 4, 4
    %s61 = scalar_lea.vmem %s0, %s60
    %v62 = vld [vmem:[%s61] sm:%s4]
    %s63 = scalar_lea.vmem [#allocation0], 32
    %64 = vst [vmem:[%s63] sm:%s4] %v62
    %s65 = smul.addr 4, 3
    %s66 = scalar_lea.vmem %s0, %s65
    %v67 = vld [vmem:[%s66] sm:%s4]
    %s68 = scalar_lea.vmem [#allocation0], 24
    %69 = vst [vmem:[%s68] sm:%s4] %v67
    %s70 = smul.addr 4, 2
    %s71 = scalar_lea.vmem %s0, %s70
    %v72 = vld [vmem:[%s71] sm:%s4]
    %s73 = scalar_lea.vmem [#allocation0], 16
    %74 = vst [vmem:[%s73] sm:%s4] %v72
    %s75 = scalar_lea.vmem %s0, 4
    %v76 = vld [vmem:[%s75] sm:%s4]
    %s77 = scalar_lea.vmem [#allocation0], 8
    %78 = vst [vmem:[%s77] sm:%s4] %v76
    %v79 = vld [vmem:[%s0] sm:%s4]
    %80 = vst [vmem:[#allocation0] sm:%s4] %v79
    %v81 = vld [vmem:[#allocation0] ss:$8 sm:$0xf]
    %v82 = vld [vmem:[#allocation0] ss:$8 sm:$0xf0]
    %vm83 = vcmask 1047556
    %v84 = vsel %vm83, %v82, %v81
    %vm85 = vcmask 261120
    %86 = vst.msk [vmem:[%s1] sm:$0xff] %vm85, %v84
    %s87 = scalar_lea.vmem [#allocation0], 64
    %v88 = vld [vmem:[%s87] ss:$8 sm:$0xf]
    %s89 = scalar_lea.vmem [#allocation0], 64
    %v90 = vld [vmem:[%s89] ss:$8 sm:$0xf0]
    %vm91 = vcmask 1047556
    %v92 = vsel %vm91, %v90, %v88
    %vm93 = vcmask 261120
    %s94 = scalar_lea.vmem %s1, 8
    %95 = vst.msk [vmem:[%s94] sm:$0xff] %vm93, %v92
    %s96 = scalar_lea.vmem [#allocation0], 3
    %v97 = vld [vmem:[%s96] ss:$8 sm:$0xf]
    %s98 = scalar_lea.vmem [#allocation0], 3
    %v99 = vld [vmem:[%s98] ss:$8 sm:$0xf0]
    %vm100 = vcmask 1047556
    %v101 = vsel %vm100, %v99, %v97
    %102 = vrot.lane.b32.xlu0 %v101, 96
    %v103 = vpop.permute.xlu0 %102
    %vm104 = vcmask 1048320
    %105 = vst.msk [vmem:[%s1] sm:$0xff] %vm104, %v103
    %s106 = scalar_lea.vmem [#allocation0], 67
    %v107 = vld [vmem:[%s106] ss:$8 sm:$0xf]
    %s108 = scalar_lea.vmem [#allocation0], 67
    %v109 = vld [vmem:[%s108] ss:$8 sm:$0xf0]
    %vm110 = vcmask 1047556
    %v111 = vsel %vm110, %v109, %v107
    %112 = vrot.lane.b32.xlu0 %v111, 96
    %v113 = vpop.permute.xlu0 %112
    %vm114 = vcmask 1048320
    %s115 = scalar_lea.vmem %s1, 8
    %116 = vst.msk [vmem:[%s115] sm:$0xff] %vm114, %v113
    %s117 = scalar_lea.vmem [#allocation0], 2
    %v118 = vld [vmem:[%s117] ss:$8 sm:$0xf]
    %s119 = scalar_lea.vmem [#allocation0], 2
    %v120 = vld [vmem:[%s119] ss:$8 sm:$0xf0]
    %vm121 = vcmask 1047556
    %v122 = vsel %vm121, %v120, %v118
    %123 = vrot.lane.b32.xlu0 %v122, 64
    %v124 = vpop.permute.xlu0 %123
    %vm125 = vcmask 785920
    %126 = vst.msk [vmem:[%s1] sm:$0xff] %vm125, %v124
    %s127 = scalar_lea.vmem [#allocation0], 66
    %v128 = vld [vmem:[%s127] ss:$8 sm:$0xf]
    %s129 = scalar_lea.vmem [#allocation0], 66
    %v130 = vld [vmem:[%s129] ss:$8 sm:$0xf0]
    %vm131 = vcmask 1047556
    %v132 = vsel %vm131, %v130, %v128
    %133 = vrot.lane.b32.xlu0 %v132, 64
    %v134 = vpop.permute.xlu0 %133
    %vm135 = vcmask 785920
    %s136 = scalar_lea.vmem %s1, 8
    %137 = vst.msk [vmem:[%s136] sm:$0xff] %vm135, %v134
    %s138 = scalar_lea.vmem [#allocation0], 1
    %v139 = vld [vmem:[%s138] ss:$8 sm:$0xf]
    %s140 = scalar_lea.vmem [#allocation0], 1
    %v141 = vld [vmem:[%s140] ss:$8 sm:$0xf0]
    %vm142 = vcmask 1047556
    %v143 = vsel %vm142, %v141, %v139
    %144 = vrot.lane.b32.xlu0 %v143, 32
    %v145 = vpop.permute.xlu0 %144
    %vm146 = vcmask 523520
    %147 = vst.msk [vmem:[%s1] sm:$0xff] %vm146, %v145
    %s148 = scalar_lea.vmem [#allocation0], 65
    %v149 = vld [vmem:[%s148] ss:$8 sm:$0xf]
    %s150 = scalar_lea.vmem [#allocation0], 65
    %v151 = vld [vmem:[%s150] ss:$8 sm:$0xf0]
    %vm152 = vcmask 1047556
    %v153 = vsel %vm152, %v151, %v149
    %154 = vrot.lane.b32.xlu0 %v153, 32
    %v155 = vpop.permute.xlu0 %154
    %vm156 = vcmask 523520
    %s157 = scalar_lea.vmem %s1, 8
    %158 = vst.msk [vmem:[%s157] sm:$0xff] %vm156, %v155

</llo_original>
